<compile_context>
chip_gen: v7x
topology: tpu7x:2x2x1
jax: 0.10.0
libtpu: 0.0.40
codegen_flags: <defaults>
</compile_context>

<pallas_src>
import functools
import math

import numpy as np

import jax
import jax.numpy as jnp
from jax.experimental import pallas as pl
from jax.experimental.pallas import tpu as pltpu


_MIB = 1024 * 1024


# --------------------------------------------------------------------------- helpers


def _vmem_capacity_bytes():
    """Per-TensorCore VMEM capacity; conservative 64 MiB (v7x) fallback."""
    try:
        info = pltpu.get_tpu_info()
        cap = getattr(info, "vmem_capacity_bytes", None)
        if cap:
            return int(cap)
    except Exception:
        pass
    return 64 * _MIB


def _padded_bytes(shape, dtype):
    """VMEM footprint of one buffer including lane/sublane padding."""
    itemsize = np.dtype(dtype).itemsize
    dims = list(shape)
    if not dims:
        return 4
    dims[-1] = -(-dims[-1] // 128) * 128                     # lane dim -> mult of 128
    if len(dims) >= 2:
        sub = 8 * max(1, 4 // itemsize)                      # 8 (f32) / 16 (bf16)
        dims[-2] = -(-dims[-2] // sub) * sub
    n = itemsize
    for d in dims:
        n *= d
    return n


def _divisor_tile(n, cap):
    """Largest divisor of n that is <= cap, preferring MXU-friendly alignment
    (multiples of 256, then 128, then 8).  Falls back to n (full extent), which is
    always a legal BlockSpec size."""
    if n <= cap:
        return n
    divisors = [d for d in range(1, min(n, cap) + 1) if n % d == 0]
    for align in (256, 128, 8):
        cands = [d for d in divisors if d % align == 0]
        if cands:
            return max(cands)
    # TODO(synk): awkward n with no 8-aligned divisor -> full-sequence tile.
    return n


# --------------------------------------------------------------------------- linear


def _linear_kernel(x_ref, w_ref, b_ref, o_ref, *, scale):
    y = jnp.dot(x_ref[...], w_ref[...], preferred_element_type=jnp.float32)
    y = y + b_ref[...]
    if scale != 1.0:
        y = y * scale
    o_ref[...] = y.astype(o_ref.dtype)


def _linear(x2d, w, b, *, out_dtype, mxu_dtype, scale=1.0):
    """y = (x @ w + b) * scale, row-tiled.  x2d: (R, Din), w: (Din, Dout), b: (1, Dout)."""
    R, Din = x2d.shape
    Dout = w.shape[1]
    vmem_cap = _vmem_capacity_bytes()
    budget = (vmem_cap * 7 // 8) // 2

    def est(tr):
        f32 = jnp.float32
        return (2 * _padded_bytes((tr, Din), mxu_dtype)      # x (double-buffered)
                + 2 * _padded_bytes((tr, Dout), out_dtype)   # out (double-buffered)
                + 2 * _padded_bytes((Din, Dout), mxu_dtype)  # weight (constant idx)
                + 2 * _padded_bytes((1, Dout), f32)          # bias
                + 2 * _padded_bytes((tr, Dout), f32))        # matmul/add temps

    tr = _divisor_tile(R, 1024)
    while est(tr) > budget and tr > 8:
        smaller = _divisor_tile(R, max(1, tr // 2))
        if smaller >= tr:
            break
        tr = smaller

    limit = int(min(vmem_cap * 7 // 8, max(32 * _MIB, 2 * est(tr))))
    kernel = functools.partial(_linear_kernel, scale=float(scale))

    # NOTE: the weight/bias have constant index maps (fetched once, kept resident).
    # They are no longer co-resident with the attention working set in this split
    # design, so default double-buffering costs little VMEM; pl.Buffered(1) is not
    # needed here.
    return pl.pallas_call(
        kernel,
        out_shape=jax.ShapeDtypeStruct((R, Dout), out_dtype),
        grid_spec=pltpu.PrefetchScalarGridSpec(
            num_scalar_prefetch=0,
            grid=(R // tr,),
            in_specs=[
                pl.BlockSpec((tr, Din), lambda i: (i, 0)),
                pl.BlockSpec((Din, Dout), lambda i: (0, 0)),
                pl.BlockSpec((1, Dout), lambda i: (0, 0)),
            ],
            out_specs=pl.BlockSpec((tr, Dout), lambda i: (i, 0)),
        ),
        compiler_params=pltpu.CompilerParams(
            dimension_semantics=("parallel",),
            vmem_limit_bytes=limit,
        ),
    )(x2d.astype(mxu_dtype), w.astype(mxu_dtype), b.astype(jnp.float32))


# --------------------------------------------------------------------------- attention


def _flash_attention_kernel(q_ref, k_ref, v_ref, o_ref, m_scr, l_scr, acc_scr,
                            *, exact):
    kv_i = pl.program_id(2)

    @pl.when(kv_i == 0)
    def _init():
        m_scr[...] = jnp.full(m_scr.shape, -jnp.inf, m_scr.dtype)
        l_scr[...] = jnp.zeros(l_scr.shape, l_scr.dtype)
        acc_scr[...] = jnp.zeros(acc_scr.shape, acc_scr.dtype)

    # Heads are folded into the leading batch dim: one batched einsum pair per kv
    # step (no Python per-head unroll).  Softmax scale is already folded into q.
    s = jnp.einsum('bqd,bkd->bqk', q_ref[...], k_ref[...],
                   preferred_element_type=jnp.float32)           # (Bt, Tq, Tkv) f32

    m_prev = m_scr[...]
    m_new = jnp.maximum(m_prev, jnp.max(s, axis=-1, keepdims=True))
    alpha = jnp.exp(m_prev - m_new)
    p = jnp.exp(s - m_new)
    l_scr[...] = alpha * l_scr[...] + jnp.sum(p, axis=-1, keepdims=True)
    acc_scr[...] = alpha * acc_scr[...] + jnp.einsum(
        'bqk,bkd->bqd', p.astype(v_ref.dtype), v_ref[...],
        preferred_element_type=jnp.float32)
    m_scr[...] = m_new
    # TODO(synk): dropout on attention probabilities omitted (eval-mode identity).

    @pl.when(kv_i == pl.num_programs(2) - 1)
    def _finalize():
        if exact:
            inv_l = 1.0 / l_scr[...]                  # exact on the f32 check path
        else:
            inv_l = pl.reciprocal(l_scr[...], approx=True)      # EUP slot (~free)
        o_ref[...] = (acc_scr[...] * inv_l).astype(o_ref.dtype)


def _flash_attention(qh, kh, vh, *, mxu_dtype, q_tile=None, kv_tile=None,
                     batch_tile=None):
    """qh/kh/vh: (B*H, N, hd) per-head slabs, q pre-scaled.  Returns the
    (B*H, N, hd) attention context (unprojected)."""
    BH, N, hd = qh.shape
    f32 = jnp.float32
    exact = np.dtype(mxu_dtype) == np.dtype(jnp.float32)

    vmem_cap = _vmem_capacity_bytes()
    budget = (vmem_cap * 7 // 8) // 2

    def est(bt, tq, tkv):
        io = 2 * (2 * _padded_bytes((bt, tq, hd), mxu_dtype)       # q in + ctx out
                  + 2 * _padded_bytes((bt, tkv, hd), mxu_dtype))   # k + v
        scratch = (2 * _padded_bytes((bt, tq, 1), f32)             # m, l
                   + _padded_bytes((bt, tq, hd), f32))             # acc
        temps = (3 * _padded_bytes((bt, tq, tkv), f32)             # scores / probs
                 + 2 * _padded_bytes((bt, tq, hd), f32))
        return io + scratch + temps

    tq = q_tile or _divisor_tile(N, 512)
    tkv = kv_tile or _divisor_tile(N, 512)
    for _ in range(64):                      # shrink seq tiles until budget is met
        if est(1, tq, tkv) <= budget:
            break
        if tkv >= tq:
            new = _divisor_tile(N, max(1, tkv // 2))
            if new < tkv:
                tkv = new
                continue
        new = _divisor_tile(N, max(1, tq // 2))
        if new < tq:
            tq = new
            continue
        new = _divisor_tile(N, max(1, tkv // 2))
        if new < tkv:
            tkv = new
            continue
        break

    if batch_tile is not None:
        bt = batch_tile
    else:
        # Largest leading (batch*heads) tile that fits the budget, while keeping
        # at least 2 steps on a "parallel" axis (megacore on v7x); the q-tile axis
        # counts as providing that parallelism when N // tq >= 2.
        bt = 1
        for cand in range(min(BH, 4096), 0, -1):
            if BH % cand != 0 or est(cand, tq, tkv) > budget:
                continue
            if (BH // cand) * (N // tq) < 2 and cand > 1 and BH >= 2:
                continue
            bt = cand
            break

    grid = (BH // bt, N // tq, N // tkv)
    limit = int(min(vmem_cap * 7 // 8, max(32 * _MIB, 2 * est(bt, tq, tkv))))
    kernel = functools.partial(_flash_attention_kernel, exact=exact)

    return pl.pallas_call(
        kernel,
        out_shape=jax.ShapeDtypeStruct((BH, N, hd), mxu_dtype),
        grid_spec=pltpu.PrefetchScalarGridSpec(
            num_scalar_prefetch=0,
            grid=grid,
            in_specs=[
                pl.BlockSpec((bt, tq, hd), lambda b, qi, ki: (b, qi, 0)),
                pl.BlockSpec((bt, tkv, hd), lambda b, qi, ki: (b, ki, 0)),
                pl.BlockSpec((bt, tkv, hd), lambda b, qi, ki: (b, ki, 0)),
            ],
            out_specs=pl.BlockSpec((bt, tq, hd), lambda b, qi, ki: (b, qi, 0)),
            scratch_shapes=[
                pltpu.VMEM((bt, tq, 1), f32),    # running max
                pltpu.VMEM((bt, tq, 1), f32),    # running sum
                pltpu.VMEM((bt, tq, hd), f32),   # running PV accumulator
            ],
        ),
        compiler_params=pltpu.CompilerParams(
            dimension_semantics=("parallel", "parallel", "arbitrary"),
            vmem_limit_bytes=limit,
        ),
    )(qh, kh, vh)


# --------------------------------------------------------------------------- wrapper


def self_attention_pallas(q, k, v, params, num_heads, *,
                          mxu_dtype=jnp.bfloat16,
                          q_tile=None, kv_tile=None, batch_tile=None):
    """SelfAttention forward.  mxu_dtype controls the matmul-operand dtype
    (bfloat16 recommended on v6e/v7x; accumulation and softmax are always f32)."""
    B, N, D = q.shape
    Dm = params["wq"].shape[1]
    H = num_heads
    # As in the PyTorch module, the (b, n, h, e) reshape requires
    # num_in_feats == (num_out_feats // num_heads) * num_heads, i.e. D == Dm here.
    assert Dm % H == 0 and D == Dm, (D, Dm, H)
    hd = Dm // H
    scale = 1.0 / math.sqrt(hd)
    out_dtype = q.dtype

    # 1) Q/K/V projections, computed once; softmax scale folded into projected Q.
    qp = _linear(q.reshape(B * N, D), params["wq"], params["bq"],
                 out_dtype=mxu_dtype, mxu_dtype=mxu_dtype, scale=scale)
    kp = _linear(k.reshape(B * N, D), params["wk"], params["bk"],
                 out_dtype=mxu_dtype, mxu_dtype=mxu_dtype)
    vp = _linear(v.reshape(B * N, D), params["wv"], params["bv"],
                 out_dtype=mxu_dtype, mxu_dtype=mxu_dtype)

    # Layout plumbing (XLA, HBM-level): (B*N, Dm) -> (B*H, N, hd) per-head slabs.
    def to_heads(x):
        x4 = jnp.transpose(x.reshape(B, N, H, hd), (0, 2, 1, 3))
        return x4.reshape(B * H, N, hd)

    # 2) Flash attention (online softmax across kv tiles).
    ctx = _flash_attention(to_heads(qp), to_heads(kp), to_heads(vp),
                           mxu_dtype=mxu_dtype, q_tile=q_tile, kv_tile=kv_tile,
                           batch_tile=batch_tile)

    # Layout plumbing: (B*H, N, hd) -> (B*N, Dm) lane-dense context slab.
    ctx2d = jnp.transpose(ctx.reshape(B, H, N, hd), (0, 2, 1, 3)).reshape(B * N, Dm)

    # 3) Output projection: a single Dm-deep GEMM.
    out = _linear(ctx2d, params["wo"], params["bo"],
                  out_dtype=out_dtype, mxu_dtype=mxu_dtype)
    return out.reshape(B, N, D)


# --------------------------------------------------------------------------- reference


def self_attention_reference(q, k, v, params, num_heads, dot_dtype=jnp.float32):
    """Pure-JAX reference mirroring the PyTorch forward (dropout = eval identity).
    dot_dtype=bfloat16 mimics the kernel's bf16-at-the-MXU-boundary casts."""
    B, N, _ = q.shape
    f32 = jnp.float32
    c = lambda x: x.astype(dot_dtype)
    qp = jnp.dot(c(q), c(params["wq"]), preferred_element_type=f32) + params["bq"]
    kp = jnp.dot(c(k), c(params["wk"]), preferred_element_type=f32) + params["bk"]
    vp = jnp.dot(c(v), c(params["wv"]), preferred_element_type=f32) + params["bv"]
    H = num_heads
    hd = qp.shape[-1] // H
    qp = qp.reshape(B, N, H, hd)
    kp = kp.reshape(B, N, H, hd)
    vp = vp.reshape(B, N, H, hd)
    scale = 1.0 / jnp.sqrt(jnp.float32(hd))
    scores = jnp.einsum("blhe,bshe->bhls", c(qp), c(kp), preferred_element_type=f32)
    probs = jax.nn.softmax(scale * scores, axis=-1)
    ctx = jnp.einsum("bhls,bshd->blhd", c(probs), c(vp), preferred_element_type=f32)
    ctx = ctx.reshape(B, N, H * hd)
    return jnp.dot(c(ctx), c(params["wo"]), preferred_element_type=f32) + params["bo"]


def init_params(key, num_in_feats, num_out_feats, num_heads):
    d_model = num_out_feats // num_heads * num_heads
    ks = jax.random.split(key, 8)

    def lin(kw, kb, fan_in, fan_out):
        bound = 1.0 / (fan_in ** 0.5)
        w = jax.random.uniform(kw, (fan_in, fan_out), jnp.float32, -bound, bound)
        b = jax.random.uniform(kb, (1, fan_out), jnp.float32, -bound, bound)
        return w, b

    wq, bq = lin(ks[0], ks[1], num_in_feats, d_model)
    wk, bk = lin(ks[2], ks[3], num_in_feats, d_model)
    wv, bv = lin(ks[4], ks[5], num_in_feats, d_model)
    wo, bo = lin(ks[6], ks[7], d_model, num_in_feats)
    return {"wq": wq, "bq": bq, "wk": wk, "bk": bk,
            "wv": wv, "bv": bv, "wo": wo, "bo": bo}


# --------------------------------------------------------------------------- test


if __name__ == "__main__":
    # Small, module-consistent shapes: the PyTorch reshape requires
    # num_in_feats == (num_out_feats // num_heads) * num_heads.
    B, N = 2, 8
    num_in_feats = 32
    num_out_feats = 32
    num_heads = 4

    key = jax.random.PRNGKey(0)
    kparam, kq, kk, kv = jax.random.split(key, 4)
    params = init_params(kparam, num_in_feats, num_out_feats, num_heads)

    q = jax.random.normal(kq, (B, N, num_in_feats), jnp.float32)
    k = jax.random.normal(kk, (B, N, num_in_feats), jnp.float32)
    v = jax.random.normal(kv, (B, N, num_in_feats), jnp.float32)

    ref_f32 = self_attention_reference(q, k, v, params, num_heads)

    # Exact-precision path (f32 MXU operands, exact reciprocal): tight logic check.
    out_f32 = jax.block_until_ready(
        self_attention_pallas(q, k, v, params, num_heads, mxu_dtype=jnp.float32))
    assert out_f32.shape == (B, N, num_in_feats), out_f32.shape
    assert jnp.allclose(out_f32, ref_f32, atol=2e-3, rtol=2e-3), \
        float(jnp.max(jnp.abs(out_f32 - ref_f32)))

    # Performance path (bf16 MXU operands, f32 accumulate / softmax).
    out_bf16 = jax.block_until_ready(
        self_attention_pallas(q, k, v, params, num_heads, mxu_dtype=jnp.bfloat16))
    ref_bf16 = self_attention_reference(q, k, v, params, num_heads,
                                        dot_dtype=jnp.bfloat16)
    assert out_bf16.shape == (B, N, num_in_feats), out_bf16.shape
    assert jnp.allclose(out_bf16, ref_bf16, atol=1e-2, rtol=1e-2), \
        float(jnp.max(jnp.abs(out_bf16 - ref_bf16)))
    assert jnp.allclose(out_bf16, ref_f32, atol=5e-2, rtol=5e-2), \
        float(jnp.max(jnp.abs(out_bf16 - ref_f32)))

    print("KERNEL_OK")
</pallas_src>

<mosaic_0001>
module attributes {stable_mosaic.version = 11 : i64} {
  func.func @_linear_kernel(%arg0: i32, %arg1: memref<16x32xf32, #tpu.memory_space<vmem>>, %arg2: memref<32x32xf32, #tpu.memory_space<vmem>>, %arg3: memref<1x32xf32, #tpu.memory_space<vmem>>, %arg4: memref<16x32xf32, #tpu.memory_space<vmem>>) attributes {dimension_semantics = [#tpu.dimension_semantics<parallel>], iteration_bounds = array<i64: 1>, scalar_prefetch = 0 : i64, scratch_operands = 0 : i64, tpu.core_type = #tpu.core_type<tc>, window_params = [{transform_indices = @transform_0, window_bounds = array<i64: 16, 32>}, {pipeline_mode = #tpu.pipeline_mode<synchronous>, transform_indices = @transform_1, window_bounds = array<i64: 32, 32>}, {pipeline_mode = #tpu.pipeline_mode<synchronous>, transform_indices = @transform_2, window_bounds = array<i64: 1, 32>}, {transform_indices = @transform_3, window_bounds = array<i64: 16, 32>}]} {
    %c0 = arith.constant 0 : index
    %c0_0 = arith.constant 0 : index
    %0 = vector.load %arg1[%c0, %c0_0] : memref<16x32xf32, #tpu.memory_space<vmem>>, vector<16x32xf32>
    %c0_1 = arith.constant 0 : index
    %c0_2 = arith.constant 0 : index
    %1 = vector.load %arg2[%c0_1, %c0_2] : memref<32x32xf32, #tpu.memory_space<vmem>>, vector<32x32xf32>
    %cst = arith.constant dense<0.000000e+00> : vector<16x32xf32>
    %2 = tpu.matmul %0, %1, %cst {dimension_numbers = #tpu.dot_dimension_numbers<[1], [0], [0], [1], [0, 0, 1, 1], [], []>} : vector<16x32xf32>, vector<32x32xf32>, vector<16x32xf32> -> vector<16x32xf32>
    %c0_3 = arith.constant 0 : index
    %c0_4 = arith.constant 0 : index
    %3 = vector.load %arg3[%c0_3, %c0_4] : memref<1x32xf32, #tpu.memory_space<vmem>>, vector<1x32xf32>
    %4 = vector.broadcast %3 : vector<1x32xf32> to vector<16x32xf32>
    %5 = arith.addf %2, %4 : vector<16x32xf32>
    %cst_5 = arith.constant 0.353553385 : f32
    %6 = vector.broadcast %cst_5 : f32 to vector<16x32xf32>
    %7 = arith.mulf %5, %6 : vector<16x32xf32>
    %c0_6 = arith.constant 0 : index
    %c0_7 = arith.constant 0 : index
    %8 = vector.load %arg4[%c0_6, %c0_7] : memref<16x32xf32, #tpu.memory_space<vmem>>, vector<16x32xf32>
    tpu.vector_store %arg4[%c0_6, %c0_7], %7 {strides = array<i32>} : memref<16x32xf32, #tpu.memory_space<vmem>>, vector<16x32xf32>,
    return
  }
  func.func @transform_0(%arg0: i32) -> (i32, i32) {
    %c0_i32 = arith.constant 0 : i32
    %c0_i32_0 = arith.constant 0 : i32
    return %arg0, %c0_i32 : i32, i32
  }
  func.func @transform_1(%arg0: i32) -> (i32, i32) {
    %c0_i32 = arith.constant 0 : i32
    %c0_i32_0 = arith.constant 0 : i32
    %c0_i32_1 = arith.constant 0 : i32
    return %c0_i32, %c0_i32_0 : i32, i32
  }
  func.func @transform_2(%arg0: i32) -> (i32, i32) {
    %c0_i32 = arith.constant 0 : i32
    %c0_i32_0 = arith.constant 0 : i32
    %c0_i32_1 = arith.constant 0 : i32
    return %c0_i32, %c0_i32_0 : i32, i32
  }
  func.func @transform_3(%arg0: i32) -> (i32, i32) {
    %c0_i32 = arith.constant 0 : i32
    %c0_i32_0 = arith.constant 0 : i32
    return %arg0, %c0_i32 : i32, i32
  }
}

</mosaic_0001>

<llo_original>
// kernel: tpu_custom_call.1
$region0: #{tpu_custom_call.1}
  #allocation0 [shape = 'u32[]', space=smem, size = 0x4, offset = 0x4, fixed_abs, tag = 'smem constant byte address 0x4 - core index']
  #allocation1 [shape = 'u32[144,128]{1,0:T(1,128)}', space=vmem, size = 0x12000, scoped, tag = 'internal scratch']
  %s0 = inlined_call_operand.hbm [shape: f32[16,32], index: 0, kind: input, shape index: {}]
  %s1 = inlined_call_operand.hbm [shape: f32[32,32], index: 1, kind: input, shape index: {}]
  %s2 = inlined_call_operand.vmem [shape: f32[1,32], index: 2, kind: input, shape index: {}]
  %s3 = inlined_call_operand.hbm [shape: f32[16,32], index: 3, kind: output, shape index: {}]
  %s4 = sld [smem:[#allocation0]]
  $region30: #{tpu_custom_call.1} parent=0
    _
  %s6 = ssub.s32 1, %s4
  %s7 = scalar_select 0, %s6, %s4
  $region1: #{tpu_custom_call.1} parent=0
    #allocation2 [shape = 'u8[8192]{0}', space=vmem, size = 0x2000, scoped, tag = 'input window, operand 0, single buffered']
    #allocation3 [shape = 's32[1]{0}', space=sflag, size = 0x4, scoped, tag = 'scoped memory for tpu_custom_call.1']
    #allocation4 [shape = 's32[1]{0}', space=sflag, size = 0x4, scoped, tag = 'scoped memory for tpu_custom_call.1']
    #allocation5 [shape = 'u8[16384]{0}', space=vmem, size = 0x4000, scoped, tag = 'input window, operand 1, single buffered']
    #allocation6 [shape = 's32[1]{0}', space=sflag, size = 0x4, scoped, tag = 'scoped memory for tpu_custom_call.1']
    #allocation7 [shape = 'u8[8192]{0}', space=vmem, size = 0x2000, scoped, tag = 'output window, operand 0, single buffered']
    %8 = vsyncpa [#allocation3], 0
    %9 = vsyncpa [#allocation6], 0
    %10 = vsyncpa [#allocation4], 0
    // Predicated region
    $region2: #{tpu_custom_call.1} parent=1 // pred_check
      _
    $region3: #{tpu_custom_call.1} parent=1 // pred_check_branch
      %12 = sbr.rel (0) target = $region5
    $region4: #{tpu_custom_call.1} parent=1 // pred_region
      %s14 = ssub.s32 256, 256
      %15 = vsyncadd [#allocation3], %s14
      %s16 = sshll.u32 [#allocation2], 4
      %s17 = int_to_ptr.vmem [resolvable:$true] %s16
      %22 = dma.hbm_to_vmem [thread:$0]  %s0, 256, %s17, [#allocation3], 128, 128, 8
    $region5: #{tpu_custom_call.1} parent=1 // pred_fallthru
      _
    // Predicated region
    $region6: #{tpu_custom_call.1} parent=1 // pred_check
      _
    $region7: #{tpu_custom_call.1} parent=1 // pred_check_branch
      %24 = sbr.rel (0) target = $region9
    $region8: #{tpu_custom_call.1} parent=1 // pred_region
      %s26 = ssub.s32 512, 512
      %27 = vsyncadd [#allocation6], %s26
      %s28 = sshll.u32 [#allocation5], 4
      %s29 = int_to_ptr.vmem [resolvable:$true] %s28
      %34 = dma.hbm_to_vmem [thread:$0]  %s1, 512, %s29, [#allocation6], 128, 128, 8
    $region9: #{tpu_custom_call.1} parent=1 // pred_fallthru
      _
    // Predicated region
    $region10: #{tpu_custom_call.1} parent=1 // pred_check
      _
    $region11: #{tpu_custom_call.1} parent=1 // pred_check_branch
      %36 = sbr.rel (0) target = $region13
    $region12: #{tpu_custom_call.1} parent=1 // pred_region
      _
    $region13: #{tpu_custom_call.1} parent=1 // pred_fallthru
      _
    // Predicated region
    $region14: #{tpu_custom_call.1} parent=1 // pred_check
      _
    $region15: #{tpu_custom_call.1} parent=1 // pred_check_branch
      %38 = sbr.rel (0) target = $region17
    $region16: #{tpu_custom_call.1} parent=1 // pred_region
      %39 = dma.done [#allocation3], 256
    $region17: #{tpu_custom_call.1} parent=1 // pred_fallthru
      _
    // Predicated region
    $region18: #{tpu_custom_call.1} parent=1 // pred_check
      _
    $region19: #{tpu_custom_call.1} parent=1 // pred_check_branch
      %41 = sbr.rel (0) target = $region21
    $region20: #{tpu_custom_call.1} parent=1 // pred_region
      %42 = dma.done [#allocation6], 512
    $region21: #{tpu_custom_call.1} parent=1 // pred_fallthru
      _
    %v43 = vld [vmem:[#allocation2] sm:$0xff]
    %v44 = vld [vmem:[#allocation2 + $0x8] sm:$0xff]
    %v45 = vld [vmem:[#allocation5] sm:$0xff]
    %v46 = vld [vmem:[#allocation5 + $0x8] sm:$0xff]
    %v47 = vld [vmem:[#allocation5 + $0x10] sm:$0xff]
    %v48 = vld [vmem:[#allocation5 + $0x18] sm:$0xff]
    %v49 = vld [vmem:[%s2] sm:$0x1]
    %v51 = vlaneseq
    %v52 = vshrl.u32 %v51, 7
    %v53 = vsub.s32 0, %v52
    %v54 = vrot.slane %v49, %v53
    %vm56 = vcmask 261120
    %v58 = vsel %vm56, %v43, 0
    %v61 = vsel %vm56, %v44, 0
    %63 = vmatprep.subr.mxu0 0.0
    %64 = vmatpush1.msra.mxu0 %v45
    %65 = vmatprep.subr.mxu0 0.0
    %66 = vmatpush1.msra.mxu0 %v46
    %67 = vmatprep.subr.mxu0 0.0
    %68 = vmatpush1.msra.mxu0 %v47
    %69 = vmatprep.subr.mxu0 0.0
    %70 = vmatpush1.msra.mxu0 %v48
    %71 = vmatprep.subr.mxu0 0.0
    %72 = vmatpush1.msra.mxu0 0.0
    %73 = vmatprep.subr.mxu0 0.0
    %74 = vmatpush1.msra.mxu0 0.0
    %75 = vmatprep.subr.mxu0 0.0
    %76 = vmatpush1.msra.mxu0 0.0
    %77 = vmatprep.subr.mxu0 0.0
    %78 = vmatpush1.msra.mxu0 0.0
    %79 = vmatprep.subr.mxu0 0.0
    %80 = vmatpush1.msra.mxu0 0.0
    %81 = vmatprep.subr.mxu0 0.0
    %82 = vmatpush1.msra.mxu0 0.0
    %83 = vmatprep.subr.mxu0 0.0
    %84 = vmatpush1.msra.mxu0 0.0
    %85 = vmatprep.subr.mxu0 0.0
    %86 = vmatpush1.msra.mxu0 0.0
    %87 = vmatprep.subr.mxu0 0.0
    %88 = vmatpush1.msra.mxu0 0.0
    %89 = vmatprep.subr.mxu0 0.0
    %90 = vmatpush1.msra.mxu0 0.0
    %91 = vmatprep.subr.mxu0 0.0
    %92 = vmatpush1.msra.mxu0 0.0
    %93 = vmatprep.subr.mxu0 0.0
    %94 = vmatpush1.msra.mxu0 0.0
    %95 = vmatprep.subr.mxu0 0.0
    %96 = vmatpush1.msra.mxu0 0.0
    %97 = vmatprep.subr.mxu0 0.0
    %98 = vmatpush1.msra.mxu0 0.0
    %99 = vmatprep.subr.mxu0 0.0
    %100 = vmatpush1.msra.mxu0 0.0
    %101 = vmatprep.subr.mxu0 0.0
    %102 = vmatpush1.msra.mxu0 0.0
    %103 = vmatprep.subr.mxu0 0.0
    %104 = vmatpush1.msra.mxu0 0.0
    %105 = vmatprep.subr.mxu0 0.0
    %106 = vmatpush1.msra.mxu0 0.0
    %107 = vmatprep.subr.mxu0 0.0
    %108 = vmatpush1.msra.mxu0 0.0
    %109 = vmatprep.subr.mxu0 0.0
    %110 = vmatpush1.msra.mxu0 0.0
    %111 = vmatprep.subr.mxu0 0.0
    %112 = vmatpush1.msra.mxu0 0.0
    %113 = vmatprep.subr.mxu0 0.0
    %114 = vmatpush1.msra.mxu0 0.0
    %115 = vmatprep.subr.mxu0 0.0
    %116 = vmatpush1.msra.mxu0 0.0
    %117 = vmatprep.subr.mxu0 0.0
    %118 = vmatpush1.msra.mxu0 0.0
    %119 = vmatprep.subr.mxu0 0.0
    %120 = vmatpush1.msra.mxu0 0.0
    %121 = vmatprep.subr.mxu0 0.0
    %122 = vmatpush1.msra.mxu0 0.0
    %123 = vmatprep.subr.mxu0 0.0
    %124 = vmatpush1.msra.mxu0 0.0
    %125 = vmatprep.subr.mxu0 0.0
    %126 = vmatpush1.msra.mxu0 0.0
    %127 = vmatprep.mubr.f32.mxu0 0.0
    %128 = vmatmul.mubr.f32.gmra.mrb[0].mxu0 %v58
    %v129 = vpop.f32.mrb[0].mxu0
    %v130 = vadd.f32 %v54, %v129
    %v131 = vpop.f32.mrb[0].mxu0
    %132 = vmatprep.mubr.f32.mxu0 0.0
    %133 = vmatmul.mubr.f32.gmra.mrb[0].mxu0 %v61
    %v134 = vpop.f32.mrb[0].mxu0
    %v135 = vadd.f32 %v54, %v134
    %v136 = vpop.f32.mrb[0].mxu0
    %137 = vdwg.mxu0
    %v138 = vmul.f32 %v130, 0.35355338
    %v139 = vmul.f32 %v135, 0.35355338
    %140 = vst.msk [vmem:[#allocation7] sm:$0xff] %vm56, %v138
    %141 = vst.msk [vmem:[#allocation7 + $0x8] sm:$0xff] %vm56, %v139
    // Predicated region
    $region22: #{tpu_custom_call.1} parent=1 // pred_check
      _
    $region23: #{tpu_custom_call.1} parent=1 // pred_check_branch
      %143 = sbr.rel (0) target = $region25
    $region24: #{tpu_custom_call.1} parent=1 // pred_region
      %s145 = ssub.s32 256, 256
      %146 = vsyncadd [#allocation4], %s145
      %s147 = sshll.u32 [#allocation7], 4
      %s148 = int_to_ptr.vmem [resolvable:$true] %s147
      %153 = dma.vmem_to_hbm [thread:$0]  %s148, 256, %s3, [#allocation4], 128, 128, 8
    $region25: #{tpu_custom_call.1} parent=1 // pred_fallthru
      _
    // Predicated region
    $region26: #{tpu_custom_call.1} parent=1 // pred_check
      _
    $region27: #{tpu_custom_call.1} parent=1 // pred_check_branch
      %155 = sbr.rel (0) target = $region29
    $region28: #{tpu_custom_call.1} parent=1 // pred_region
      %156 = dma.done [#allocation4], 256
    $region29: #{tpu_custom_call.1} parent=1 // pred_fallthru
      _
    %157 = vsyncpa [#allocation3], 1
    %158 = vsyncpa [#allocation6], 1
    %159 = vsyncpa [#allocation4], 1

</llo_original>
